<compile_context>
chip_gen: v5e
topology: v5e:2x2
jax: 0.10.0
libtpu: 0.0.40
codegen_flags: <defaults>
</compile_context>

<pallas_src>
import functools

import jax
import jax.numpy as jnp
from jax import lax
from jax.experimental import pallas as pl
from jax.experimental.pallas import tpu as pltpu

_LANE = 128


def _round_up(x, m):
    return ((x + m - 1) // m) * m


def _linear_kernel(tk, x_ref, w_ref, b_ref, o_ref, acc_ref):
    # x_ref  : (TM, TK)          activation tile (streams over M and K)
    # w_ref  : (K, N_pad)        full weight, VMEM-resident, [K, N] MXU layout
    # b_ref  : (1, N_pad)        f32 bias, resident
    # o_ref  : (TM, N_pad)       lane-dense output tile
    # acc_ref: (TM, N_pad) f32   accumulator scratch (persists across K steps)
    k = pl.program_id(1)

    @pl.when(k == 0)
    def _():
        acc_ref[...] = jnp.zeros_like(acc_ref)

    # Slice the K chunk out of the resident weight (no per-step weight DMA,
    # no per-step transpose: RHS is already [K, N]).
    k_start = pl.multiple_of(k * tk, tk)
    w_blk = w_ref[pl.ds(k_start, tk), :]

    acc_ref[...] += jnp.dot(
        x_ref[...], w_blk,
        preferred_element_type=jnp.float32,
        precision=lax.Precision.HIGHEST)

    @pl.when(k == pl.num_programs(1) - 1)
    def _():
        o_ref[...] = (acc_ref[...] + b_ref[...]).astype(o_ref.dtype)


def _vmem_plan():
    """Return (tile working-set budget, vmem_limit_bytes), generation-aware."""
    try:
        cap = int(pltpu.get_tpu_info().vmem_capacity_bytes)
    except Exception:  # pragma: no cover - be conservative if the query fails
        cap = 64 * 1024 * 1024
    if cap <= 64 * 1024 * 1024:
        # v7x: 64 MiB physical per TC -> leave headroom for compiler scratch.
        return 28 * 1024 * 1024, 40 * 1024 * 1024
    # v5e / v6e: 128 MiB physical VMEM.
    return 80 * 1024 * 1024, 100 * 1024 * 1024


def _tile_bytes(tm, tk, input_dim, n_pad, itemsize):
    """Exact-ish VMEM working set for one (tm, tk) tiling (N already lane-padded)."""
    x_bytes = 2 * tm * tk * itemsize              # streamed activations (double-buffered)
    w_bytes = 2 * input_dim * n_pad * itemsize    # resident weight (conservative: 2 bufs)
    o_bytes = 2 * tm * n_pad * itemsize           # streamed output
    acc_bytes = tm * n_pad * 4                    # f32 accumulator scratch
    b_bytes = 2 * n_pad * 4                       # f32 bias
    return x_bytes + w_bytes + o_bytes + acc_bytes + b_bytes


def _choose_tiles(batch, input_dim, n_pad, itemsize, vmem_budget):
    # K tile: full K unless large; otherwise the largest multiple of 128 that divides
    # input_dim exactly (no garbage from partial K blocks enters the reduction).
    tk = input_dim
    if input_dim > 4096:
        for cand in (4096, 2048, 1024, 512, 256, 128):
            if input_dim % cand == 0:
                tk = cand
                break

    if batch < 512:
        # Small batch: one full M block (always a legal block shape).
        if _tile_bytes(batch, tk, input_dim, n_pad, itemsize) <= vmem_budget:
            return batch, tk
        max_tm = batch
    else:
        # Large batch: guarantee >= 2 M blocks so megacore (v7x) can shard the
        # "parallel" M axis across both TensorCores.
        max_tm = _round_up(-(-batch // 2), 8)

    for tm in (4096, 2048, 1024, 512, 256, 128, 64, 32, 16, 8):
        if tm <= max_tm and _tile_bytes(tm, tk, input_dim, n_pad, itemsize) <= vmem_budget:
            return tm, tk
    return (batch if batch < 8 else 8), tk


@functools.partial(jax.jit, static_argnums=(3, 4))
def aux_info_head_forward(backbone_embed, weight, bias, num_cards, num_players):
    """Pallas implementation of AuxInfoHead.forward.

    backbone_embed: [..., input_dim]
    weight:         [num_cards*num_players, input_dim]  (PyTorch nn.Linear layout)
    bias:           [num_cards*num_players]
    returns:        [..., num_cards, num_players]
    """
    *lead, input_dim = backbone_embed.shape
    n_out = num_cards * num_players
    out_shape_full = tuple(lead) + (num_cards, num_players)

    x2d = backbone_embed.reshape((-1, input_dim))
    batch = x2d.shape[0]
    if batch == 0:  # empty leading dims: nothing to compute
        return jnp.zeros(out_shape_full, dtype=backbone_embed.dtype)

    n_pad = max(_LANE, _round_up(n_out, _LANE))

    # One-time tiny wrapper-side prep: transpose weight to [K, N] and zero-pad N to a
    # lane-dense multiple of 128 (unmasked stores, dense acc vregs, full MXU columns).
    w_t = jnp.swapaxes(weight, 0, 1)                       # [input_dim, n_out]
    b_f32 = bias.astype(jnp.float32)
    if n_pad != n_out:
        w_t = jnp.pad(w_t, ((0, 0), (0, n_pad - n_out)))
        b_f32 = jnp.pad(b_f32, (0, n_pad - n_out))
    b2d = b_f32.reshape((1, n_pad))

    itemsize = jnp.dtype(backbone_embed.dtype).itemsize
    vmem_budget, vmem_limit = _vmem_plan()
    tm, tk = _choose_tiles(batch, input_dim, n_pad, itemsize, vmem_budget)
    grid = (pl.cdiv(batch, tm), pl.cdiv(input_dim, tk))

    out2d = pl.pallas_call(
        functools.partial(_linear_kernel, tk),
        out_shape=jax.ShapeDtypeStruct((batch, n_pad), backbone_embed.dtype),
        grid_spec=pltpu.PrefetchScalarGridSpec(
            num_scalar_prefetch=0,
            grid=grid,
            in_specs=[
                # activations: stream over M and K (double-buffered).
                pl.BlockSpec((tm, tk), lambda i, k: (i, k)),
                # weight: fully resident (constant index map -> DMA'd once per call).
                pl.BlockSpec((input_dim, n_pad), lambda i, k: (0, 0)),
                # bias: fully resident.
                pl.BlockSpec((1, n_pad), lambda i, k: (0, 0)),
            ],
            out_specs=pl.BlockSpec((tm, n_pad), lambda i, k: (i, 0)),
            scratch_shapes=[pltpu.VMEM((tm, n_pad), jnp.float32)],
        ),
        compiler_params=pltpu.CompilerParams(
            dimension_semantics=("parallel", "arbitrary"),
            vmem_limit_bytes=vmem_limit,
        ),
        cost_estimate=pl.CostEstimate(
            flops=2 * batch * input_dim * n_pad,
            transcendentals=0,
            bytes_accessed=(batch * input_dim * itemsize      # x read once
                            + input_dim * n_pad * itemsize    # resident weight, read once
                            + n_pad * 4                       # bias
                            + batch * n_pad * itemsize),      # output written once
        ),
    )(x2d, w_t, b2d)

    return out2d[:, :n_out].reshape(out_shape_full)


if __name__ == "__main__":
    # Small shapes consistent with the module's forward.
    batch = 2
    input_dim = 32
    num_cards = 8
    num_players = 4
    n_out = num_cards * num_players

    key = jax.random.PRNGKey(0)
    k_x, k_w, k_b = jax.random.split(key, 3)

    x = jax.random.normal(k_x, (batch, input_dim), dtype=jnp.float32)
    # Deterministic synthetic parameters (same shapes as nn.Linear(input_dim, n_out)).
    weight = jax.random.normal(k_w, (n_out, input_dim), dtype=jnp.float32) * 0.1
    bias = jax.random.normal(k_b, (n_out,), dtype=jnp.float32) * 0.1

    out = aux_info_head_forward(x, weight, bias, num_cards, num_players)
    out = jax.block_until_ready(out)

    ref = (jnp.dot(x, weight.T, precision=lax.Precision.HIGHEST) + bias).reshape(
        batch, num_cards, num_players)
    assert out.shape == (batch, num_cards, num_players)
    assert jnp.allclose(out, ref, atol=1e-5, rtol=1e-5)

    # Also check multi-dim leading batch (the .view(..., num_cards, num_players) path).
    x3 = jax.random.normal(key, (2, 3, input_dim), dtype=jnp.float32)
    out3 = jax.block_until_ready(
        aux_info_head_forward(x3, weight, bias, num_cards, num_players))
    ref3 = (jnp.dot(x3, weight.T, precision=lax.Precision.HIGHEST) + bias).reshape(
        2, 3, num_cards, num_players)
    assert out3.shape == (2, 3, num_cards, num_players)
    assert jnp.allclose(out3, ref3, atol=1e-5, rtol=1e-5)

    print("KERNEL_OK")
</pallas_src>

<mosaic_0001>
module attributes {stable_mosaic.version = 11 : i64} {
  func.func @_linear_kernel(%arg0: i32, %arg1: i32, %arg2: memref<2x32xf32, #tpu.memory_space<vmem>>, %arg3: memref<32x128xf32, #tpu.memory_space<vmem>>, %arg4: memref<1x128xf32, #tpu.memory_space<vmem>>, %arg5: memref<2x128xf32, #tpu.memory_space<vmem>>, %arg6: memref<2x128xf32, #tpu.memory_space<vmem>>) attributes {dimension_semantics = [#tpu.dimension_semantics<parallel>, #tpu.dimension_semantics<arbitrary>], iteration_bounds = array<i64: 1, 1>, scalar_prefetch = 0 : i64, scratch_operands = 1 : i64, tpu.core_type = #tpu.core_type<tc>, window_params = [{transform_indices = @transform_0, window_bounds = array<i64: 2, 32>}, {pipeline_mode = #tpu.pipeline_mode<synchronous>, transform_indices = @transform_1, window_bounds = array<i64: 32, 128>}, {pipeline_mode = #tpu.pipeline_mode<synchronous>, transform_indices = @transform_2, window_bounds = array<i64: 1, 128>}, {transform_indices = @transform_3, window_bounds = array<i64: 2, 128>}]} {
    %c0_i32 = arith.constant 0 : i32
    %0 = arith.cmpi eq, %arg1, %c0_i32 : i32
    %1 = arith.extui %0 : i1 to i32
    %c0_i32_0 = arith.constant 0 : i32
    %2 = arith.cmpi ne, %1, %c0_i32_0 : i32
    scf.if %2 {
      %cst_9 = arith.constant 0.000000e+00 : f32
      %15 = vector.broadcast %cst_9 : f32 to vector<2x128xf32>
      %c0_10 = arith.constant 0 : index
      %c0_11 = arith.constant 0 : index
      %16 = vector.load %arg6[%c0_10, %c0_11] : memref<2x128xf32, #tpu.memory_space<vmem>>, vector<2x128xf32>
      tpu.vector_store %arg6[%c0_10, %c0_11], %15 {strides = array<i32>} : memref<2x128xf32, #tpu.memory_space<vmem>>, vector<2x128xf32>,
    } else {
    }
    %c32_i32 = arith.constant 32 : i32
    %3 = arith.muli %arg1, %c32_i32 : i32
    %4 = tpu.assume_multiple %3, 32 : i32
    %5 = arith.index_cast %4 : i32 to index
    %c0 = arith.constant 0 : index
    %6 = vector.load %arg3[%5, %c0] : memref<32x128xf32, #tpu.memory_space<vmem>>, vector<32x128xf32>
    %c0_1 = arith.constant 0 : index
    %c0_2 = arith.constant 0 : index
    %7 = vector.load %arg6[%c0_1, %c0_2] : memref<2x128xf32, #tpu.memory_space<vmem>>, vector<2x128xf32>
    %c0_3 = arith.constant 0 : index
    %c0_4 = arith.constant 0 : index
    %8 = vector.load %arg2[%c0_3, %c0_4] : memref<2x32xf32, #tpu.memory_space<vmem>>, vector<2x32xf32>
    %cst = arith.constant dense<0.000000e+00> : vector<2x128xf32>
    %9 = tpu.matmul %8, %6, %cst {dimension_numbers = #tpu.dot_dimension_numbers<[1], [0], [0], [1], [0, 0, 1, 1], [], []>, precision = #tpu.contract_precision<fp32>} : vector<2x32xf32>, vector<32x128xf32>, vector<2x128xf32> -> vector<2x128xf32>
    %10 = arith.addf %7, %9 : vector<2x128xf32>
    %c0_5 = arith.constant 0 : index
    %c0_6 = arith.constant 0 : index
    %11 = vector.load %arg6[%c0_5, %c0_6] : memref<2x128xf32, #tpu.memory_space<vmem>>, vector<2x128xf32>
    tpu.vector_store %arg6[%c0_5, %c0_6], %10 {strides = array<i32>} : memref<2x128xf32, #tpu.memory_space<vmem>>, vector<2x128xf32>,
    %c0_i32_7 = arith.constant 0 : i32
    %12 = arith.cmpi eq, %arg1, %c0_i32_7 : i32
    %13 = arith.extui %12 : i1 to i32
    %c0_i32_8 = arith.constant 0 : i32
    %14 = arith.cmpi ne, %13, %c0_i32_8 : i32
    scf.if %14 {
      %c0_9 = arith.constant 0 : index
      %c0_10 = arith.constant 0 : index
      %15 = vector.load %arg6[%c0_9, %c0_10] : memref<2x128xf32, #tpu.memory_space<vmem>>, vector<2x128xf32>
      %c0_11 = arith.constant 0 : index
      %c0_12 = arith.constant 0 : index
      %16 = vector.load %arg4[%c0_11, %c0_12] : memref<1x128xf32, #tpu.memory_space<vmem>>, vector<1x128xf32>
      %17 = vector.broadcast %16 : vector<1x128xf32> to vector<2x128xf32>
      %18 = arith.addf %15, %17 : vector<2x128xf32>
      %c0_13 = arith.constant 0 : index
      %c0_14 = arith.constant 0 : index
      %19 = vector.load %arg5[%c0_13, %c0_14] : memref<2x128xf32, #tpu.memory_space<vmem>>, vector<2x128xf32>
      tpu.vector_store %arg5[%c0_13, %c0_14], %18 {strides = array<i32>} : memref<2x128xf32, #tpu.memory_space<vmem>>, vector<2x128xf32>,
    } else {
    }
    return
  }
  func.func @transform_0(%arg0: i32, %arg1: i32) -> (i32, i32) {
    %c0_i32 = arith.constant 0 : i32
    return %arg0, %arg1 : i32, i32
  }
  func.func @transform_1(%arg0: i32, %arg1: i32) -> (i32, i32) {
    %c0_i32 = arith.constant 0 : i32
    %c0_i32_0 = arith.constant 0 : i32
    %c0_i32_1 = arith.constant 0 : i32
    return %c0_i32, %c0_i32_0 : i32, i32
  }
  func.func @transform_2(%arg0: i32, %arg1: i32) -> (i32, i32) {
    %c0_i32 = arith.constant 0 : i32
    %c0_i32_0 = arith.constant 0 : i32
    %c0_i32_1 = arith.constant 0 : i32
    return %c0_i32, %c0_i32_0 : i32, i32
  }
  func.func @transform_3(%arg0: i32, %arg1: i32) -> (i32, i32) {
    %c0_i32 = arith.constant 0 : i32
    %c0_i32_0 = arith.constant 0 : i32
    return %arg0, %c0_i32 : i32, i32
  }
}

</mosaic_0001>

<llo_original>
// kernel: aux_info_head_forward.1
$region0: #{aux_info_head_forward.1}
  #allocation0 [shape = 'u32[]', space=smem, size = 0x4, offset = 0x4, fixed_abs, tag = 'smem constant byte address 0x4 - core index']
  #allocation1 [shape = 'u32[72,128]{1,0:T(1,128)}', space=vmem, size = 0x9000, scoped, tag = 'internal scratch']
  #allocation2 [shape = 'f32[2,128]{1,0:T(2,128)}', space=vmem, size = 0x400, scoped, tag = 'scratch operand']
  %s0 = inlined_call_operand.vmem [shape: f32[2,32], index: 0, kind: input, shape index: {}]
  %s1 = inlined_call_operand.vmem [shape: f32[32,128], index: 1, kind: input, shape index: {}]
  %s2 = inlined_call_operand.vmem [shape: f32[1,128], index: 2, kind: input, shape index: {}]
  %s3 = inlined_call_operand.vmem [shape: f32[2,128], index: 3, kind: output, shape index: {}]
  %s4 = sld [smem:[#allocation0]]
  $region30: #{aux_info_head_forward.1} parent=0
    _
  %s6 = ssub.s32 1, %s4
  %s7 = scalar_select 0, %s6, %s4
  // Predicated region
  $region2: #{aux_info_head_forward.1} parent=0 // pred_check
    _
  $region3: #{aux_info_head_forward.1} parent=0 // pred_check_branch
    %9 = sbr.rel (0) target = $region5
  $region4: #{aux_info_head_forward.1} parent=0 // pred_region
    _
  $region5: #{aux_info_head_forward.1} parent=0 // pred_fallthru
    _
  // Predicated region
  $region6: #{aux_info_head_forward.1} parent=0 // pred_check
    _
  $region7: #{aux_info_head_forward.1} parent=0 // pred_check_branch
    %11 = sbr.rel (0) target = $region9
  $region8: #{aux_info_head_forward.1} parent=0 // pred_region
    _
  $region9: #{aux_info_head_forward.1} parent=0 // pred_fallthru
    _
  // Predicated region
  $region10: #{aux_info_head_forward.1} parent=0 // pred_check
    _
  $region11: #{aux_info_head_forward.1} parent=0 // pred_check_branch
    %13 = sbr.rel (0) target = $region13
  $region12: #{aux_info_head_forward.1} parent=0 // pred_region
    _
  $region13: #{aux_info_head_forward.1} parent=0 // pred_fallthru
    _
  %p14 = scmp.eq.s32.totalorder 0, 0
  // Predicated region
  $region14: #{aux_info_head_forward.1} parent=0 // pred_check
    %p15 = pneg %p14
  $region15: #{aux_info_head_forward.1} parent=0 // pred_check_branch
    %17 = sbr.rel (%p15) target = $region17
  $region16: #{aux_info_head_forward.1} parent=0 // pred_region
    %18 = vst [vmem:[#allocation2] sm:$0x3] 0.0
  $region17: #{aux_info_head_forward.1} parent=0 // pred_fallthru
    _
  %s19 = smul.u32 0, 32
  %s20 = scalar_lea.vmem %s1, %s19
  %v21 = vld [vmem:[%s20] sm:$0xff]
  %v22 = vld [vmem:[%s20 + $0x8] sm:$0xff]
  %v23 = vld [vmem:[%s20 + $0x10] sm:$0xff]
  %v24 = vld [vmem:[%s20 + $0x18] sm:$0xff]
  %v25 = vld [vmem:[#allocation2] sm:$0x3]
  %v26 = vld [vmem:[%s0] sm:$0x3]
  %vm27 = vcmask 261120
  %v29 = vsel %vm27, %v26, 0
  %31 = vmatpush.msra.mxu0 0.0
  %32 = vmatpush.msra.mxu0 0.0
  %33 = vmatpush.msra.mxu0 0.0
  %34 = vmatpush.msra.mxu0 0.0
  %35 = vmatpush.msra.mxu0 0.0
  %36 = vmatpush.msra.mxu0 0.0
  %37 = vmatpush.msra.mxu0 0.0
  %38 = vmatpush.msra.mxu0 0.0
  %39 = vmatpush.msra.mxu0 0.0
  %40 = vmatpush.msra.mxu0 0.0
  %41 = vmatpush.msra.mxu0 0.0
  %42 = vmatpush.msra.mxu0 0.0
  %v43 = vand.u32 %v24, 4294901760
  %44 = vmatpush.msra.mxu0 %v43
  %v45 = vand.u32 %v23, 4294901760
  %46 = vmatpush.msra.mxu0 %v45
  %v47 = vand.u32 %v22, 4294901760
  %48 = vmatpush.msra.mxu0 %v47
  %v49 = vand.u32 %v21, 4294901760
  %50 = vmatpush.msra.mxu0 %v49
  %v51 = vand.u32 %v29, 4294901760
  %v52 = vsub.f32 %v29, %v51
  %v53 = vand.u32 %v52, 4294901760
  %v54 = vsub.f32 %v52, %v53
  %v55 = vand.u32 %v54, 4294901760
  %56 = vmatmul.f32.gmra.mxu0 %v55
  %v57 = vpop.f32.mrf.mxu0
  %v58 = vadd.f32 0.0, %v57
  %59 = vdwg.mxu0
  %60 = vmatpush.msra.mxu0 0.0
  %61 = vmatpush.msra.mxu0 0.0
  %62 = vmatpush.msra.mxu0 0.0
  %63 = vmatpush.msra.mxu0 0.0
  %64 = vmatpush.msra.mxu0 0.0
  %65 = vmatpush.msra.mxu0 0.0
  %66 = vmatpush.msra.mxu0 0.0
  %67 = vmatpush.msra.mxu0 0.0
  %68 = vmatpush.msra.mxu0 0.0
  %69 = vmatpush.msra.mxu0 0.0
  %70 = vmatpush.msra.mxu0 0.0
  %71 = vmatpush.msra.mxu0 0.0
  %v72 = vand.u32 %v24, 4294901760
  %v73 = vsub.f32 %v24, %v72
  %v74 = vand.u32 %v73, 4294901760
  %v75 = vsub.f32 %v73, %v74
  %v76 = vand.u32 %v75, 4294901760
  %77 = vmatpush.msra.mxu0 %v76
  %v78 = vand.u32 %v23, 4294901760
  %v79 = vsub.f32 %v23, %v78
  %v80 = vand.u32 %v79, 4294901760
  %v81 = vsub.f32 %v79, %v80
  %v82 = vand.u32 %v81, 4294901760
  %83 = vmatpush.msra.mxu0 %v82
  %v84 = vand.u32 %v22, 4294901760
  %v85 = vsub.f32 %v22, %v84
  %v86 = vand.u32 %v85, 4294901760
  %v87 = vsub.f32 %v85, %v86
  %v88 = vand.u32 %v87, 4294901760
  %89 = vmatpush.msra.mxu0 %v88
  %v90 = vand.u32 %v21, 4294901760
  %v91 = vsub.f32 %v21, %v90
  %v92 = vand.u32 %v91, 4294901760
  %v93 = vsub.f32 %v91, %v92
  %v94 = vand.u32 %v93, 4294901760
  %95 = vmatpush.msra.mxu0 %v94
  %v96 = vand.u32 %v29, 4294901760
  %97 = vmatmul.f32.gmra.mxu0 %v96
  %v98 = vpop.f32.mrf.mxu0
  %v99 = vadd.f32 %v58, %v98
  %100 = vdwg.mxu0
  %101 = vmatpush.msra.mxu0 0.0
  %102 = vmatpush.msra.mxu0 0.0
  %103 = vmatpush.msra.mxu0 0.0
  %104 = vmatpush.msra.mxu0 0.0
  %105 = vmatpush.msra.mxu0 0.0
  %106 = vmatpush.msra.mxu0 0.0
  %107 = vmatpush.msra.mxu0 0.0
  %108 = vmatpush.msra.mxu0 0.0
  %109 = vmatpush.msra.mxu0 0.0
  %110 = vmatpush.msra.mxu0 0.0
  %111 = vmatpush.msra.mxu0 0.0
  %112 = vmatpush.msra.mxu0 0.0
  %v113 = vand.u32 %v24, 4294901760
  %v114 = vsub.f32 %v24, %v113
  %115 = vmatpush.msra.mxu0 %v114
  %v116 = vand.u32 %v23, 4294901760
  %v117 = vsub.f32 %v23, %v116
  %118 = vmatpush.msra.mxu0 %v117
  %v119 = vand.u32 %v22, 4294901760
  %v120 = vsub.f32 %v22, %v119
  %121 = vmatpush.msra.mxu0 %v120
  %v122 = vand.u32 %v21, 4294901760
  %v123 = vsub.f32 %v21, %v122
  %124 = vmatpush.msra.mxu0 %v123
  %v125 = vand.u32 %v29, 4294901760
  %v126 = vsub.f32 %v29, %v125
  %127 = vmatmul.f32.gmra.mxu0 %v126
  %v128 = vpop.f32.mrf.mxu0
  %v129 = vadd.f32 %v99, %v128
  %130 = vdwg.mxu0
  %131 = vmatpush.msra.mxu0 0.0
  %132 = vmatpush.msra.mxu0 0.0
  %133 = vmatpush.msra.mxu0 0.0
  %134 = vmatpush.msra.mxu0 0.0
  %135 = vmatpush.msra.mxu0 0.0
  %136 = vmatpush.msra.mxu0 0.0
  %137 = vmatpush.msra.mxu0 0.0
  %138 = vmatpush.msra.mxu0 0.0
  %139 = vmatpush.msra.mxu0 0.0
  %140 = vmatpush.msra.mxu0 0.0
  %141 = vmatpush.msra.mxu0 0.0
  %142 = vmatpush.msra.mxu0 0.0
  %v143 = vand.u32 %v24, 4294901760
  %144 = vmatpush.msra.mxu0 %v143
  %v145 = vand.u32 %v23, 4294901760
  %146 = vmatpush.msra.mxu0 %v145
  %v147 = vand.u32 %v22, 4294901760
  %148 = vmatpush.msra.mxu0 %v147
  %v149 = vand.u32 %v21, 4294901760
  %150 = vmatpush.msra.mxu0 %v149
  %v151 = vand.u32 %v29, 4294901760
  %v152 = vsub.f32 %v29, %v151
  %v153 = vand.u32 %v152, 4294901760
  %154 = vmatmul.f32.gmra.mxu0 %v153
  %v155 = vpop.f32.mrf.mxu0
  %v156 = vadd.f32 %v129, %v155
  %157 = vdwg.mxu0
  %158 = vmatpush.msra.mxu0 0.0
  %159 = vmatpush.msra.mxu0 0.0
  %160 = vmatpush.msra.mxu0 0.0
  %161 = vmatpush.msra.mxu0 0.0
  %162 = vmatpush.msra.mxu0 0.0
  %163 = vmatpush.msra.mxu0 0.0
  %164 = vmatpush.msra.mxu0 0.0
  %165 = vmatpush.msra.mxu0 0.0
  %166 = vmatpush.msra.mxu0 0.0
  %167 = vmatpush.msra.mxu0 0.0
  %168 = vmatpush.msra.mxu0 0.0
  %169 = vmatpush.msra.mxu0 0.0
  %v170 = vand.u32 %v24, 4294901760
  %v171 = vsub.f32 %v24, %v170
  %v172 = vand.u32 %v171, 4294901760
  %173 = vmatpush.msra.mxu0 %v172
  %v174 = vand.u32 %v23, 4294901760
  %v175 = vsub.f32 %v23, %v174
  %v176 = vand.u32 %v175, 4294901760
  %177 = vmatpush.msra.mxu0 %v176
  %v178 = vand.u32 %v22, 4294901760
  %v179 = vsub.f32 %v22, %v178
  %v180 = vand.u32 %v179, 4294901760
  %181 = vmatpush.msra.mxu0 %v180
  %v182 = vand.u32 %v21, 4294901760
  %v183 = vsub.f32 %v21, %v182
  %v184 = vand.u32 %v183, 4294901760
  %185 = vmatpush.msra.mxu0 %v184
  %v186 = vand.u32 %v29, 4294901760
  %187 = vmatmul.f32.gmra.mxu0 %v186
  %v188 = vpop.f32.mrf.mxu0
  %v189 = vadd.f32 %v156, %v188
  %190 = vdwg.mxu0
  %191 = vmatpush.msra.mxu0 0.0
  %192 = vmatpush.msra.mxu0 0.0
  %193 = vmatpush.msra.mxu0 0.0
  %194 = vmatpush.msra.mxu0 0.0
  %195 = vmatpush.msra.mxu0 0.0
  %196 = vmatpush.msra.mxu0 0.0
  %197 = vmatpush.msra.mxu0 0.0
  %198 = vmatpush.msra.mxu0 0.0
  %199 = vmatpush.msra.mxu0 0.0
  %200 = vmatpush.msra.mxu0 0.0
  %201 = vmatpush.msra.mxu0 0.0
  %202 = vmatpush.msra.mxu0 0.0
  %v203 = vand.u32 %v24, 4294901760
  %204 = vmatpush.msra.mxu0 %v203
  %v205 = vand.u32 %v23, 4294901760
  %206 = vmatpush.msra.mxu0 %v205
  %v207 = vand.u32 %v22, 4294901760
  %208 = vmatpush.msra.mxu0 %v207
  %v209 = vand.u32 %v21, 4294901760
  %210 = vmatpush.msra.mxu0 %v209
  %v211 = vand.u32 %v29, 4294901760
  %212 = vmatmul.f32.gmra.mxu0 %v211
  %v213 = vpop.f32.mrf.mxu0
  %v214 = vadd.f32 %v189, %v213
  %215 = vdwg.mxu0
  %v216 = vadd.f32 %v25, %v214
  %217 = vst [vmem:[#allocation2] sm:$0x3] %v216
  // Predicated region
  $region18: #{aux_info_head_forward.1} parent=0 // pred_check
    %p218 = pneg %p14
  $region19: #{aux_info_head_forward.1} parent=0 // pred_check_branch
    %220 = sbr.rel (%p218) target = $region21
  $region20: #{aux_info_head_forward.1} parent=0 // pred_region
    %v221 = vld [vmem:[#allocation2] sm:$0x3]
    %v222 = vld [vmem:[%s2] sm:$0x1]
    %v224 = vperm.slane %v222, 0
    %v226 = vadd.f32 %v221, %v224
    %227 = vst [vmem:[%s3] sm:$0x3] %v226
  $region21: #{aux_info_head_forward.1} parent=0 // pred_fallthru
    _
  // Predicated region
  $region22: #{aux_info_head_forward.1} parent=0 // pred_check
    _
  $region23: #{aux_info_head_forward.1} parent=0 // pred_check_branch
    %229 = sbr.rel (0) target = $region25
  $region24: #{aux_info_head_forward.1} parent=0 // pred_region
    _
  $region25: #{aux_info_head_forward.1} parent=0 // pred_fallthru
    _
  // Predicated region
  $region26: #{aux_info_head_forward.1} parent=0 // pred_check
    _
  $region27: #{aux_info_head_forward.1} parent=0 // pred_check_branch
    %231 = sbr.rel (0) target = $region29
  $region28: #{aux_info_head_forward.1} parent=0 // pred_region
    _
  $region29: #{aux_info_head_forward.1} parent=0 // pred_fallthru
    _

</llo_original>
